<compile_context>
chip_gen: v7x
topology: tpu7x:2x2x1
jax: 0.10.0
libtpu: 0.0.40
codegen_flags: <defaults>
</compile_context>

<pallas_src>
import numpy as np
import jax
import jax.numpy as jnp
from jax import lax
from jax.experimental import pallas as pl
from jax.experimental.pallas import tpu as pltpu


def _round_up(a, m):
    return ((a + m - 1) // m) * m


def _cdiv(a, b):
    return (a + b - 1) // b


def _vmem_capacity_bytes():
    """Physical VMEM per TensorCore; conservative (v7x-sized) fallback if unavailable."""
    try:
        info = pltpu.get_tpu_info()
        cap = int(getattr(info, "vmem_capacity_bytes", 0) or 0)
        if cap > 0:
            return cap
    except Exception:
        pass
    return 64 * 1024 * 1024


def _make_kernel(tr, thw, hw, n_strips, hw_tiles_per_split, needs_mask, static_unroll):
    """Build the per-tile streaming-reduction kernel (all sizes are static Python ints)."""

    def kernel(x_ref, t_ref, acc_ref):
        # grid = (S, R, H): S = parallel HW split, R = row tiles, H = inner HW tiles.
        h = pl.program_id(2)

        @pl.when(h == 0)
        def _init():
            acc_ref[...] = jnp.zeros_like(acc_ref)

        if needs_mask:
            # Global column of lane 0 of this tile.  Duplicated "overhang" tiles of the
            # S-split land at col_base >= hw and are therefore fully masked out.
            col_base = (pl.program_id(0) * hw_tiles_per_split + h) * thw
            lane_iota = lax.broadcasted_iota(jnp.int32, (1, 128), 1)

        def strip(off, acc_i, acc_d):
            # Per-strip upcast: never materializes a full (tr, thw) f32 temporary.
            xs = x_ref[:, pl.ds(off, 128)].astype(jnp.float32)
            ts = t_ref[:, pl.ds(off, 128)].astype(jnp.float32)
            if needs_mask:
                keep = (col_base + off + lane_iota) < hw
                xs = jnp.where(keep, xs, jnp.float32(0.0))
                ts = jnp.where(keep, ts, jnp.float32(0.0))
            return acc_i + xs * ts, acc_d + (xs + ts)

        zero = jnp.zeros((tr, 128), jnp.float32)
        if static_unroll:
            acc_i, acc_d = zero, zero
            for g in range(n_strips):                      # static, lane-aligned slices
                acc_i, acc_d = strip(g * 128, acc_i, acc_d)
        else:
            def body(g, carry):
                off = pl.multiple_of(g * 128, 128)
                return strip(off, carry[0], carry[1])
            acc_i, acc_d = lax.fori_loop(0, n_strips, body, (zero, zero))

        # Lane-dense, unmasked accumulator update (block resident across the inner H axis).
        acc_ref[0, :, 0:128] += acc_i
        acc_ref[0, :, 128:256] += acc_d

    return kernel


def multiclass_dice_loss(inputs, targets, weight=None, ignore_index=()):
    """Pallas implementation of MultiClassDiceLoss.forward.

    inputs, targets: [N, C, ...spatial...] with identical shapes (any float dtype).
    weight         : optional length-C per-class weights.
    ignore_index   : STATIC list/tuple of class indices to skip.
    """
    assert inputs.shape == targets.shape, "predict & target shape do not match"
    N, C = int(inputs.shape[0]), int(inputs.shape[1])
    if weight is not None:
        assert len(weight) == C, "Expect weight shape [{}], get[{}]".format(C, len(weight))
    c_eff = C - len(ignore_index)
    assert c_eff > 0, "all classes are ignored (division by zero)"

    hw = int(np.prod(inputs.shape[2:])) if inputs.ndim > 2 else 1
    rows = N * C

    # Free contiguous reshapes (no transpose, no dtype change, no padding).
    x2 = inputs.reshape(rows, hw)
    t2 = targets.reshape(rows, hw)

    itemsize = int(jnp.dtype(inputs.dtype).itemsize)

    # ---- per-generation VMEM budget ---------------------------------------------------
    vmem_cap = _vmem_capacity_bytes()
    # 2 inputs x 2 pipeline buffers x tile <= ~vmem_cap/4  =>  tile <= vmem_cap/16.
    tile_budget = max(512 * 1024, min(8 * 1024 * 1024, vmem_cap // 16))
    vmem_limit = int(min(96 * 1024 * 1024, (vmem_cap * 3) // 4))

    # ---- tiling -------------------------------------------------------------------------
    # Row tile: full row extent when small (always legal), otherwise 256-row blocks.
    tr = rows if rows <= 256 else 256
    n_row_tiles = _cdiv(rows, tr)

    hw128 = _round_up(hw, 128)
    max_lanes = max(128, (tile_budget // max(1, tr * itemsize)) // 128 * 128)
    if hw128 <= max_lanes:
        thw = hw128
    else:
        k = _cdiv(hw128, max_lanes)              # minimum #tiles within the budget
        thw = _round_up(_cdiv(hw128, k), 128)    # balanced split => waste <= 1 strip/tile
    n_hw_tiles = _cdiv(hw, thw)

    # v7x megacore: if only one row tile, split the HW stream across 2 parallel chunks.
    n_splits = 2 if (n_row_tiles == 1 and n_hw_tiles >= 2) else 1
    hw_tiles_per_split = _cdiv(n_hw_tiles, n_splits)

    needs_mask = (hw % thw != 0) or (n_splits * hw_tiles_per_split != n_hw_tiles)
    n_strips = thw // 128
    static_unroll = n_strips <= 16

    rows_acc = n_row_tiles * tr                  # accumulator row extent (>= rows)

    if n_splits * hw_tiles_per_split == n_hw_tiles:
        def in_map(s, r, h):
            return (r, s * hw_tiles_per_split + h)
    else:
        def in_map(s, r, h):                     # clamp the single overhang tile in-bounds
            return (r, jnp.minimum(s * hw_tiles_per_split + h, n_hw_tiles - 1))

    kernel = _make_kernel(tr, thw, hw, n_strips, hw_tiles_per_split,
                          needs_mask, static_unroll)

    cost = pl.CostEstimate(
        flops=3 * rows * hw,
        transcendentals=0,
        bytes_accessed=2 * rows * hw * itemsize + n_splits * rows_acc * 256 * 4,
    )

    acc = pl.pallas_call(
        kernel,
        out_shape=jax.ShapeDtypeStruct((n_splits, rows_acc, 256), jnp.float32),
        grid=(n_splits, n_row_tiles, hw_tiles_per_split),
        in_specs=[
            pl.BlockSpec((tr, thw), in_map),     # x tile
            pl.BlockSpec((tr, thw), in_map),     # t tile
        ],
        out_specs=pl.BlockSpec((1, tr, 256), lambda s, r, h: (s, r, 0)),
        compiler_params=pltpu.CompilerParams(
            dimension_semantics=("parallel", "parallel", "arbitrary"),
            vmem_limit_bytes=vmem_limit,
        ),
        cost_estimate=cost,
    )(x2, t2)

    # ---- tiny epilogue in plain JAX on the (N, C) partial sums -------------------------
    acc = jnp.sum(acc, axis=0)                                  # fold the parallel HW splits
    inter = jnp.sum(acc[:rows, 0:128], axis=-1).reshape(N, C)   # sum_hw(x * t)
    denom = jnp.sum(acc[:rows, 128:256], axis=-1).reshape(N, C) # sum_hw(x) + sum_hw(t)

    smooth = jnp.float32(1.0)
    dice = (2.0 * inter + smooth) / (denom + smooth + jnp.float32(1e-5))
    loss_per_class = jnp.mean(1.0 - dice, axis=0)               # (C,) mean over batch

    w = (jnp.ones((C,), jnp.float32) if weight is None
         else jnp.asarray(weight, jnp.float32))
    include = jnp.asarray(
        [0.0 if i in ignore_index else 1.0 for i in range(C)], jnp.float32)

    return jnp.sum(loss_per_class * w * include) / jnp.float32(c_eff)


def _reference(inputs, targets, weight=None, ignore_index=()):
    """Pure-JAX transcription of the PyTorch module, for a silent sanity check."""
    N, C = inputs.shape[0], inputs.shape[1]
    total = jnp.float32(0.0)
    for i in range(C):
        if i in ignore_index:
            continue
        xi = inputs[:, i].reshape(N, -1).astype(jnp.float32)
        ti = targets[:, i].reshape(N, -1).astype(jnp.float32)
        inter = jnp.sum(xi * ti, axis=1)
        dice = (2 * inter + 1) / (jnp.sum(xi, axis=1) + jnp.sum(ti, axis=1) + 1 + 1e-5)
        loss = jnp.mean(1 - dice)
        if weight is not None:
            loss = loss * weight[i]
        total = total + loss
    return total / (C - len(ignore_index))


if __name__ == "__main__":
    key = jax.random.PRNGKey(0)
    k1, k2, k3, k4 = jax.random.split(key, 4)

    # Case 1: module defaults, [N, C, H, W] = [2, 4, 16, 16]
    N, C, H, W = 2, 4, 16, 16
    x = jax.nn.sigmoid(jax.random.normal(k1, (N, C, H, W), jnp.float32))   # soft predictions
    labels = jax.random.randint(k2, (N, H, W), 0, C)
    t = jnp.transpose(jax.nn.one_hot(labels, C, dtype=jnp.float32), (0, 3, 1, 2))

    loss = jax.block_until_ready(multiclass_dice_loss(x, t))
    ref = _reference(x, t)
    assert np.allclose(np.asarray(loss), np.asarray(ref), rtol=1e-5, atol=1e-6), (loss, ref)

    # Case 2: per-class weights + one ignored class
    wgt = [0.1, 0.2, 0.3, 0.4]
    loss2 = jax.block_until_ready(
        multiclass_dice_loss(x, t, weight=wgt, ignore_index=(1,)))
    ref2 = _reference(x, t, weight=wgt, ignore_index=(1,))
    assert np.allclose(np.asarray(loss2), np.asarray(ref2), rtol=1e-5, atol=1e-6), (loss2, ref2)

    # Case 3: non-128-aligned spatial size exercises the in-kernel tail mask (no jnp.pad).
    N3, C3, H3, W3 = 2, 3, 10, 13
    x3 = jax.nn.sigmoid(jax.random.normal(k3, (N3, C3, H3, W3), jnp.float32))
    labels3 = jax.random.randint(k4, (N3, H3, W3), 0, C3)
    t3 = jnp.transpose(jax.nn.one_hot(labels3, C3, dtype=jnp.float32), (0, 3, 1, 2))
    loss3 = jax.block_until_ready(multiclass_dice_loss(x3, t3))
    ref3 = _reference(x3, t3)
    assert np.allclose(np.asarray(loss3), np.asarray(ref3), rtol=1e-5, atol=1e-6), (loss3, ref3)

    print("KERNEL_OK")
</pallas_src>

<mosaic_0001>
module attributes {stable_mosaic.version = 11 : i64} {
  func.func @kernel(%arg0: i32, %arg1: i32, %arg2: i32, %arg3: memref<8x256xf32, #tpu.memory_space<vmem>>, %arg4: memref<8x256xf32, #tpu.memory_space<vmem>>, %arg5: memref<1x8x256xf32, #tpu.memory_space<vmem>>) attributes {dimension_semantics = [#tpu.dimension_semantics<parallel>, #tpu.dimension_semantics<parallel>, #tpu.dimension_semantics<arbitrary>], iteration_bounds = array<i64: 1, 1, 1>, scalar_prefetch = 0 : i64, scratch_operands = 0 : i64, tpu.core_type = #tpu.core_type<tc>, window_params = [{transform_indices = @transform_0, window_bounds = array<i64: 8, 256>}, {transform_indices = @transform_1, window_bounds = array<i64: 8, 256>}, {transform_indices = @transform_2, window_bounds = array<i64: 1, 8, 256>}]} {
    %c0_i32 = arith.constant 0 : i32
    %0 = arith.cmpi eq, %arg2, %c0_i32 : i32
    %1 = arith.extui %0 : i1 to i32
    %c0_i32_0 = arith.constant 0 : i32
    %2 = arith.cmpi ne, %1, %c0_i32_0 : i32
    scf.if %2 {
      %cst_19 = arith.constant 0.000000e+00 : f32
      %28 = vector.broadcast %cst_19 : f32 to vector<1x8x256xf32>
      %c0_20 = arith.constant 0 : index
      %c0_21 = arith.constant 0 : index
      %c0_22 = arith.constant 0 : index
      %29 = vector.load %arg5[%c0_20, %c0_21, %c0_22] : memref<1x8x256xf32, #tpu.memory_space<vmem>>, vector<1x8x256xf32>
      tpu.vector_store %arg5[%c0_20, %c0_21, %c0_22], %28 {strides = array<i32>} : memref<1x8x256xf32, #tpu.memory_space<vmem>>, vector<1x8x256xf32>,
    } else {
    }
    %cst = arith.constant 0.000000e+00 : f32
    %3 = vector.broadcast %cst : f32 to vector<8x128xf32>
    %c0 = arith.constant 0 : index
    %c0_1 = arith.constant 0 : index
    %4 = vector.load %arg3[%c0, %c0_1] : memref<8x256xf32, #tpu.memory_space<vmem>>, vector<8x128xf32>
    %c0_2 = arith.constant 0 : index
    %c0_3 = arith.constant 0 : index
    %5 = vector.load %arg4[%c0_2, %c0_3] : memref<8x256xf32, #tpu.memory_space<vmem>>, vector<8x128xf32>
    %6 = arith.mulf %4, %5 : vector<8x128xf32>
    %7 = arith.addf %3, %6 : vector<8x128xf32>
    %8 = arith.addf %4, %5 : vector<8x128xf32>
    %9 = arith.addf %3, %8 : vector<8x128xf32>
    %c0_4 = arith.constant 0 : index
    %c128 = arith.constant 128 : index
    %10 = vector.load %arg3[%c0_4, %c128] : memref<8x256xf32, #tpu.memory_space<vmem>>, vector<8x128xf32>
    %c0_5 = arith.constant 0 : index
    %c128_6 = arith.constant 128 : index
    %11 = vector.load %arg4[%c0_5, %c128_6] : memref<8x256xf32, #tpu.memory_space<vmem>>, vector<8x128xf32>
    %12 = arith.mulf %10, %11 : vector<8x128xf32>
    %13 = arith.addf %7, %12 : vector<8x128xf32>
    %14 = arith.addf %10, %11 : vector<8x128xf32>
    %15 = arith.addf %9, %14 : vector<8x128xf32>
    %c0_7 = arith.constant 0 : index
    %c0_8 = arith.constant 0 : index
    %c0_9 = arith.constant 0 : index
    %16 = vector.load %arg5[%c0_7, %c0_8, %c0_9] : memref<1x8x256xf32, #tpu.memory_space<vmem>>, vector<1x8x128xf32>
    %17 = vector.shape_cast %16 : vector<1x8x128xf32> to vector<8x128xf32>
    %18 = arith.addf %17, %13 : vector<8x128xf32>
    %c0_10 = arith.constant 0 : index
    %c0_11 = arith.constant 0 : index
    %c0_12 = arith.constant 0 : index
    %19 = vector.load %arg5[%c0_10, %c0_11, %c0_12] : memref<1x8x256xf32, #tpu.memory_space<vmem>>, vector<1x8x128xf32>
    %20 = vector.shape_cast %19 : vector<1x8x128xf32> to vector<8x128xf32>
    %21 = vector.shape_cast %18 : vector<8x128xf32> to vector<1x8x128xf32>
    tpu.vector_store %arg5[%c0_10, %c0_11, %c0_12], %21 {strides = array<i32>} : memref<1x8x256xf32, #tpu.memory_space<vmem>>, vector<1x8x128xf32>,
    %c0_13 = arith.constant 0 : index
    %c0_14 = arith.constant 0 : index
    %c128_15 = arith.constant 128 : index
    %22 = vector.load %arg5[%c0_13, %c0_14, %c128_15] : memref<1x8x256xf32, #tpu.memory_space<vmem>>, vector<1x8x128xf32>
    %23 = vector.shape_cast %22 : vector<1x8x128xf32> to vector<8x128xf32>
    %24 = arith.addf %23, %15 : vector<8x128xf32>
    %c0_16 = arith.constant 0 : index
    %c0_17 = arith.constant 0 : index
    %c128_18 = arith.constant 128 : index
    %25 = vector.load %arg5[%c0_16, %c0_17, %c128_18] : memref<1x8x256xf32, #tpu.memory_space<vmem>>, vector<1x8x128xf32>
    %26 = vector.shape_cast %25 : vector<1x8x128xf32> to vector<8x128xf32>
    %27 = vector.shape_cast %24 : vector<8x128xf32> to vector<1x8x128xf32>
    tpu.vector_store %arg5[%c0_16, %c0_17, %c128_18], %27 {strides = array<i32>} : memref<1x8x256xf32, #tpu.memory_space<vmem>>, vector<1x8x128xf32>,
    return
  }
  func.func @transform_0(%arg0: i32, %arg1: i32, %arg2: i32) -> (i32, i32) {
    %c1_i32 = arith.constant 1 : i32
    %0 = arith.muli %arg0, %c1_i32 : i32
    %1 = arith.addi %0, %arg2 : i32
    %c0_i32 = arith.constant 0 : i32
    return %arg1, %1 : i32, i32
  }
  func.func @transform_1(%arg0: i32, %arg1: i32, %arg2: i32) -> (i32, i32) {
    %c1_i32 = arith.constant 1 : i32
    %0 = arith.muli %arg0, %c1_i32 : i32
    %1 = arith.addi %0, %arg2 : i32
    %c0_i32 = arith.constant 0 : i32
    return %arg1, %1 : i32, i32
  }
  func.func @transform_2(%arg0: i32, %arg1: i32, %arg2: i32) -> (i32, i32, i32) {
    %c0_i32 = arith.constant 0 : i32
    %c0_i32_0 = arith.constant 0 : i32
    return %arg0, %arg1, %c0_i32 : i32, i32, i32
  }
}

</mosaic_0001>

<llo_original>
// kernel: tpu_custom_call.1
$region0: #{tpu_custom_call.1}
  #allocation0 [shape = 'u32[]', space=smem, size = 0x4, offset = 0x4, fixed_abs, tag = 'smem constant byte address 0x4 - core index']
  #allocation1 [shape = 'u32[144,128]{1,0:T(1,128)}', space=vmem, size = 0x12000, scoped, tag = 'internal scratch']
  %s0 = inlined_call_operand.hbm [shape: f32[8,256], index: 0, kind: input, shape index: {}]
  %s1 = inlined_call_operand.hbm [shape: f32[8,256], index: 1, kind: input, shape index: {}]
  %s2 = inlined_call_operand.hbm [shape: f32[1,8,256], index: 2, kind: output, shape index: {}]
  %s3 = sld [smem:[#allocation0]]
  $region30: #{tpu_custom_call.1} parent=0
    _
  %s5 = ssub.s32 1, %s3
  %s6 = scalar_select 0, %s5, %s3
  $region1: #{tpu_custom_call.1} parent=0
    #allocation2 [shape = 'u8[8192]{0}', space=vmem, size = 0x2000, scoped, tag = 'input window, operand 0, single buffered']
    #allocation3 [shape = 's32[1]{0}', space=sflag, size = 0x4, scoped, tag = 'scoped memory for tpu_custom_call.1']
    #allocation4 [shape = 's32[1]{0}', space=sflag, size = 0x4, scoped, tag = 'scoped memory for tpu_custom_call.1']
    #allocation5 [shape = 'u8[8192]{0}', space=vmem, size = 0x2000, scoped, tag = 'input window, operand 1, single buffered']
    #allocation6 [shape = 's32[1]{0}', space=sflag, size = 0x4, scoped, tag = 'scoped memory for tpu_custom_call.1']
    #allocation7 [shape = 'u8[8192]{0}', space=vmem, size = 0x2000, scoped, tag = 'output window, operand 0, single buffered']
    %7 = vsyncpa [#allocation3], 0
    %8 = vsyncpa [#allocation6], 0
    %9 = vsyncpa [#allocation4], 0
    // Predicated region
    $region2: #{tpu_custom_call.1} parent=1 // pred_check
      _
    $region3: #{tpu_custom_call.1} parent=1 // pred_check_branch
      %11 = sbr.rel (0) target = $region5
    $region4: #{tpu_custom_call.1} parent=1 // pred_region
      %s12 = sadd.s32 0, 0
      %s13 = smul.u32 2, %s12
      %s15 = ssub.s32 256, 256
      %16 = vsyncadd [#allocation3], %s15
      %s17 = smul.addr %s13, 128
      %s18 = scalar_lea.hbm %s0, %s17
      %s20 = sshll.u32 [#allocation2], 4
      %s21 = int_to_ptr.vmem [resolvable:$true] %s20
      %23 = dma.hbm_to_vmem [thread:$0]  %s18, 256, %s21, [#allocation3]
    $region5: #{tpu_custom_call.1} parent=1 // pred_fallthru
      _
    // Predicated region
    $region6: #{tpu_custom_call.1} parent=1 // pred_check
      _
    $region7: #{tpu_custom_call.1} parent=1 // pred_check_branch
      %25 = sbr.rel (0) target = $region9
    $region8: #{tpu_custom_call.1} parent=1 // pred_region
      %s26 = sadd.s32 0, 0
      %s27 = smul.u32 2, %s26
      %s29 = ssub.s32 256, 256
      %30 = vsyncadd [#allocation6], %s29
      %s31 = smul.addr %s27, 128
      %s32 = scalar_lea.hbm %s1, %s31
      %s34 = sshll.u32 [#allocation5], 4
      %s35 = int_to_ptr.vmem [resolvable:$true] %s34
      %37 = dma.hbm_to_vmem [thread:$0]  %s32, 256, %s35, [#allocation6]
    $region9: #{tpu_custom_call.1} parent=1 // pred_fallthru
      _
    // Predicated region
    $region10: #{tpu_custom_call.1} parent=1 // pred_check
      _
    $region11: #{tpu_custom_call.1} parent=1 // pred_check_branch
      %39 = sbr.rel (0) target = $region13
    $region12: #{tpu_custom_call.1} parent=1 // pred_region
      %40 = dma.done [#allocation3], 256
    $region13: #{tpu_custom_call.1} parent=1 // pred_fallthru
      _
    // Predicated region
    $region14: #{tpu_custom_call.1} parent=1 // pred_check
      _
    $region15: #{tpu_custom_call.1} parent=1 // pred_check_branch
      %42 = sbr.rel (0) target = $region17
    $region16: #{tpu_custom_call.1} parent=1 // pred_region
      %43 = dma.done [#allocation6], 256
    $region17: #{tpu_custom_call.1} parent=1 // pred_fallthru
      _
    %s44 = sadd.s32 0, 0
    %s45 = smul.u32 2, %s44
    %s46 = sadd.s32 0, 0
    %s47 = smul.u32 2, %s46
    %p48 = scmp.eq.s32.totalorder 0, 0
    // Predicated region
    $region18: #{tpu_custom_call.1} parent=1 // pred_check
      %p49 = pneg %p48
    $region19: #{tpu_custom_call.1} parent=1 // pred_check_branch
      %51 = sbr.rel (%p49) target = $region21
    $region20: #{tpu_custom_call.1} parent=1 // pred_region
      %52 = vst [vmem:[#allocation7] sm:$0xff] 0.0
      %53 = vst [vmem:[#allocation7 + $0x8] sm:$0xff] 0.0
    $region21: #{tpu_custom_call.1} parent=1 // pred_fallthru
      _
    %v54 = vld [vmem:[#allocation2] sm:$0xff]
    %v55 = vld [vmem:[#allocation5] sm:$0xff]
    %v56 = vmul.f32 %v54, %v55
    %v57 = vadd.f32 %v56, 0.0
    %v58 = vadd.f32 %v54, %v55
    %v59 = vadd.f32 %v58, 0.0
    %v60 = vld [vmem:[#allocation2 + $0x8] sm:$0xff]
    %v61 = vld [vmem:[#allocation5 + $0x8] sm:$0xff]
    %v62 = vmul.f32 %v60, %v61
    %v63 = vadd.f32 %v57, %v62
    %v64 = vadd.f32 %v60, %v61
    %v65 = vadd.f32 %v59, %v64
    %v66 = vld [vmem:[#allocation7] sm:$0xff]
    %v67 = vadd.f32 %v66, %v63
    %68 = vst [vmem:[#allocation7] sm:$0xff] %v67
    %v69 = vld [vmem:[#allocation7 + $0x8] sm:$0xff]
    %v70 = vadd.f32 %v69, %v65
    %71 = vst [vmem:[#allocation7 + $0x8] sm:$0xff] %v70
    // Predicated region
    $region22: #{tpu_custom_call.1} parent=1 // pred_check
      _
    $region23: #{tpu_custom_call.1} parent=1 // pred_check_branch
      %73 = sbr.rel (0) target = $region25
    $region24: #{tpu_custom_call.1} parent=1 // pred_region
      %s75 = ssub.s32 256, 256
      %76 = vsyncadd [#allocation4], %s75
      %s78 = sshll.u32 [#allocation7], 4
      %s79 = int_to_ptr.vmem [resolvable:$true] %s78
      %81 = dma.vmem_to_hbm [thread:$0]  %s79, 256, %s2, [#allocation4]
    $region25: #{tpu_custom_call.1} parent=1 // pred_fallthru
      _
    // Predicated region
    $region26: #{tpu_custom_call.1} parent=1 // pred_check
      _
    $region27: #{tpu_custom_call.1} parent=1 // pred_check_branch
      %83 = sbr.rel (0) target = $region29
    $region28: #{tpu_custom_call.1} parent=1 // pred_region
      %84 = dma.done [#allocation4], 256
    $region29: #{tpu_custom_call.1} parent=1 // pred_fallthru
      _
    %85 = vsyncpa [#allocation3], 1
    %86 = vsyncpa [#allocation6], 1
    %87 = vsyncpa [#allocation4], 1

</llo_original>
